<compile_context>
chip_gen: v7x
topology: tpu7x:2x2x1
jax: 0.10.0
libtpu: 0.0.40
codegen_flags: <defaults>
</compile_context>

<pallas_src>
import functools

import jax
import jax.numpy as jnp
from jax.experimental import pallas as pl
from jax.experimental.pallas import tpu as pltpu


def _widthap_kernel(x_ref, o_ref, *, width: int):
    # x_ref: (R, TN) VMEM tile;  o_ref: (L, TN) VMEM tile;  R = L + width - 1.
    L, TN = o_ref.shape
    R = x_ref.shape[0]
    inv_width = 1.0 / width

    if width <= 8:
        # Unrolled shifted-slice accumulation (f32 accumulator: safe on all
        # generations; v5e VPU has no bf16 anyway).
        acc = x_ref[0:L, :].astype(jnp.float32)
        for k in range(1, width):
            acc = acc + x_ref[k:k + L, :].astype(jnp.float32)
        o_ref[...] = (acc * inv_width).astype(o_ref.dtype)
    else:
        # Prefix-sum windowed mean: O(log R) passes instead of O(width).
        # Manual Hillis-Steele inclusive scan along rows using only
        # slice/concat/add (guaranteed Mosaic lowering).  Kept in f32 to avoid
        # cancellation in the subtraction.
        cs = x_ref[...].astype(jnp.float32)  # (R, TN)
        shift = 1
        while shift < R:
            z = jnp.zeros((shift, TN), jnp.float32)
            cs = cs + jnp.concatenate([z, cs[:R - shift, :]], axis=0)
            shift *= 2
        # window_sum[i] = cs[i + width - 1] - (cs[i - 1] if i > 0 else 0)
        upper = cs[width - 1:width - 1 + L, :]
        if L > 1:
            lower = jnp.concatenate(
                [jnp.zeros((1, TN), jnp.float32), cs[:L - 1, :]], axis=0)
        else:
            lower = jnp.zeros_like(upper)
        o_ref[...] = ((upper - lower) * inv_width).astype(o_ref.dtype)


def _pick_lane_tile(N: int, R: int, L: int, dsize: int) -> int:
    """Choose the lane-tile width TN (multiple of 128, or the full dim)."""
    if N <= 128:
        return N  # full (small) lane extent; nothing more to pack.
    # Budget per single-buffered step so 2x(in + out) double-buffered tiles
    # stay comfortably under v5e's 16 MiB scoped-VMEM default.
    budget = 6 << 20
    tn_cap = max(128, (budget // max(1, (R + L) * dsize)) // 128 * 128)
    # Prefer >= 2 parallel grid steps so v7x's second TensorCore gets work.
    half = ((N + 1) // 2 + 127) // 128 * 128
    return max(128, min(tn_cap, half))


def width_ap(x: jax.Array, width: int) -> jax.Array:
    """Average pooling over windows of `width` rows (stride 1).

    Args:
      x: (B, 1, max_length + width - 1, H) array (NCHW, single channel).
      width: window width along the row axis.

    Returns:
      (B, 1, max_length, H) array, same dtype as x.
    """
    B, C, R, H = x.shape
    assert C == 1, "WidthAP expects a single-channel feature map"
    L = R - width + 1
    assert L >= 1, "input rows must be >= width"

    dtype = x.dtype
    dsize = jnp.dtype(dtype).itemsize

    # Lane-dense layout: rows (pool axis) -> sublanes, batch*feature -> lanes.
    N = B * H
    x2 = jnp.transpose(x.reshape(B, R, H), (1, 0, 2)).reshape(R, N)

    TN = _pick_lane_tile(N, R, L, dsize)
    num_tiles = pl.cdiv(N, TN)

    # VMEM budget: double-buffered input + output tiles, plus margin.
    step_bytes = (R + L) * TN * dsize
    vmem_limit = int(min(48 << 20, max(16 << 20, 3 * step_bytes)))

    # Memory-bound op: advise XLA's scheduler.
    cost = pl.CostEstimate(
        flops=int(width * L * N + L * N),
        transcendentals=0,
        bytes_accessed=int((R + L) * N * dsize),
    )

    out2 = pl.pallas_call(
        functools.partial(_widthap_kernel, width=width),
        out_shape=jax.ShapeDtypeStruct((L, N), dtype),
        grid_spec=pltpu.PrefetchScalarGridSpec(
            num_scalar_prefetch=0,
            grid=(num_tiles,),
            in_specs=[pl.BlockSpec((R, TN), lambda j: (0, j))],
            out_specs=pl.BlockSpec((L, TN), lambda j: (0, j)),
        ),
        compiler_params=pltpu.CompilerParams(
            dimension_semantics=("parallel",),
            vmem_limit_bytes=vmem_limit,
        ),
        cost_estimate=cost,
    )(x2)

    # Back to NCHW.
    return jnp.transpose(out2.reshape(L, B, H), (1, 0, 2)).reshape(B, 1, L, H)


if __name__ == "__main__":
    def reference(x, width):
        L = x.shape[2] - width + 1
        return jnp.stack(
            [x[:, :, k:k + L, :] for k in range(width)], axis=0).mean(axis=0)

    key = jax.random.PRNGKey(0)
    k1, k2 = jax.random.split(key)

    # Case 1: small shapes from the module's forward contract
    # (batch=2, channels=1, max_length=8, width=3, height=16).
    batch, width, max_length, height = 2, 3, 8, 16
    rows = max_length + width - 1
    x1 = jax.random.normal(k1, (batch, 1, rows, height), dtype=jnp.float32)
    out1 = jax.block_until_ready(width_ap(x1, width))
    ref1 = reference(x1, width)
    assert out1.shape == (batch, 1, max_length, height)
    assert jnp.allclose(out1, ref1, atol=1e-5, rtol=1e-5), "case 1 mismatch"

    # Case 2: wider lane extent + large window -> exercises lane tiling
    # (multiple parallel grid steps, partial last block) and the scan path.
    batch2, width2, max_length2, height2 = 4, 10, 24, 96  # N = 384 lanes
    rows2 = max_length2 + width2 - 1
    x2 = jax.random.normal(k2, (batch2, 1, rows2, height2), dtype=jnp.float32)
    out2 = jax.block_until_ready(width_ap(x2, width2))
    ref2 = reference(x2, width2)
    assert out2.shape == (batch2, 1, max_length2, height2)
    assert jnp.allclose(out2, ref2, atol=1e-5, rtol=1e-5), "case 2 mismatch"

    print("KERNEL_OK")
</pallas_src>

<mosaic_0001>
module attributes {stable_mosaic.version = 11 : i64} {
  func.func @_widthap_kernel(%arg0: i32, %arg1: memref<10x32xf32, #tpu.memory_space<vmem>>, %arg2: memref<8x32xf32, #tpu.memory_space<vmem>>) attributes {dimension_semantics = [#tpu.dimension_semantics<parallel>], iteration_bounds = array<i64: 1>, scalar_prefetch = 0 : i64, scratch_operands = 0 : i64, tpu.core_type = #tpu.core_type<tc>, window_params = [{transform_indices = @transform_0, window_bounds = array<i64: 10, 32>}, {transform_indices = @transform_1, window_bounds = array<i64: 8, 32>}]} {
    %c0 = arith.constant 0 : index
    %c0_0 = arith.constant 0 : index
    %0 = vector.load %arg1[%c0, %c0_0] : memref<10x32xf32, #tpu.memory_space<vmem>>, vector<8x32xf32>
    %c1 = arith.constant 1 : index
    %c0_1 = arith.constant 0 : index
    %1 = vector.load %arg1[%c1, %c0_1] : memref<10x32xf32, #tpu.memory_space<vmem>>, vector<8x32xf32>
    %2 = arith.addf %0, %1 : vector<8x32xf32>
    %c2 = arith.constant 2 : index
    %c0_2 = arith.constant 0 : index
    %3 = vector.load %arg1[%c2, %c0_2] : memref<10x32xf32, #tpu.memory_space<vmem>>, vector<8x32xf32>
    %4 = arith.addf %2, %3 : vector<8x32xf32>
    %cst = arith.constant 0.333333343 : f32
    %5 = vector.broadcast %cst : f32 to vector<8x32xf32>
    %6 = arith.mulf %4, %5 : vector<8x32xf32>
    %c0_3 = arith.constant 0 : index
    %c0_4 = arith.constant 0 : index
    %7 = vector.load %arg2[%c0_3, %c0_4] : memref<8x32xf32, #tpu.memory_space<vmem>>, vector<8x32xf32>
    tpu.vector_store %arg2[%c0_3, %c0_4], %6 {strides = array<i32>} : memref<8x32xf32, #tpu.memory_space<vmem>>, vector<8x32xf32>,
    return
  }
  func.func @transform_0(%arg0: i32) -> (i32, i32) {
    %c0_i32 = arith.constant 0 : i32
    %c0_i32_0 = arith.constant 0 : i32
    return %c0_i32, %arg0 : i32, i32
  }
  func.func @transform_1(%arg0: i32) -> (i32, i32) {
    %c0_i32 = arith.constant 0 : i32
    %c0_i32_0 = arith.constant 0 : i32
    return %c0_i32, %arg0 : i32, i32
  }
}

</mosaic_0001>

<llo_original>
// kernel: tpu_custom_call.1
$region0: #{tpu_custom_call.1}
  #allocation0 [shape = 'u32[]', space=smem, size = 0x4, offset = 0x4, fixed_abs, tag = 'smem constant byte address 0x4 - core index']
  #allocation1 [shape = 'u32[144,128]{1,0:T(1,128)}', space=vmem, size = 0x12000, scoped, tag = 'internal scratch']
  %s0 = inlined_call_operand.hbm [shape: f32[10,32], index: 0, kind: input, shape index: {}]
  %s1 = inlined_call_operand.hbm [shape: f32[8,32], index: 1, kind: output, shape index: {}]
  %s2 = sld [smem:[#allocation0]]
  $region18: #{tpu_custom_call.1} parent=0
    _
  %s4 = ssub.s32 1, %s2
  %s5 = scalar_select 0, %s4, %s2
  $region1: #{tpu_custom_call.1} parent=0
    #allocation2 [shape = 'u8[8192]{0}', space=vmem, size = 0x2000, scoped, tag = 'input window, operand 0, single buffered']
    #allocation3 [shape = 's32[1]{0}', space=sflag, size = 0x4, scoped, tag = 'scoped memory for tpu_custom_call.1']
    #allocation4 [shape = 's32[1]{0}', space=sflag, size = 0x4, scoped, tag = 'scoped memory for tpu_custom_call.1']
    #allocation5 [shape = 'u8[4096]{0}', space=vmem, size = 0x1000, scoped, tag = 'output window, operand 0, single buffered']
    %6 = vsyncpa [#allocation3], 0
    %7 = vsyncpa [#allocation4], 0
    // Predicated region
    $region2: #{tpu_custom_call.1} parent=1 // pred_check
      _
    $region3: #{tpu_custom_call.1} parent=1 // pred_check_branch
      %9 = sbr.rel (0) target = $region5
    $region4: #{tpu_custom_call.1} parent=1 // pred_region
      %s11 = ssub.s32 256, 256
      %12 = vsyncadd [#allocation3], %s11
      %s13 = sshll.u32 [#allocation2], 4
      %s14 = int_to_ptr.vmem [resolvable:$true] %s13
      %19 = dma.hbm_to_vmem [thread:$0]  %s0, 256, %s14, [#allocation3], 128, 128, 8
    $region5: #{tpu_custom_call.1} parent=1 // pred_fallthru
      _
    // Predicated region
    $region6: #{tpu_custom_call.1} parent=1 // pred_check
      _
    $region7: #{tpu_custom_call.1} parent=1 // pred_check_branch
      %21 = sbr.rel (0) target = $region9
    $region8: #{tpu_custom_call.1} parent=1 // pred_region
      %22 = dma.done [#allocation3], 256
    $region9: #{tpu_custom_call.1} parent=1 // pred_fallthru
      _
    %v23 = vld [vmem:[#allocation2] sm:$0xff]
    %v24 = vld [vmem:[#allocation2 + $0x1] sm:$0xff]
    %v25 = vadd.f32 %v23, %v24
    %v26 = vld [vmem:[#allocation2 + $0x2] sm:$0xff]
    %v27 = vadd.f32 %v25, %v26
    %v28 = vmul.f32 %v27, 0.33333334
    %vm29 = vcmask 261120
    %30 = vst.msk [vmem:[#allocation5] sm:$0xff] %vm29, %v28
    // Predicated region
    $region10: #{tpu_custom_call.1} parent=1 // pred_check
      _
    $region11: #{tpu_custom_call.1} parent=1 // pred_check_branch
      %32 = sbr.rel (0) target = $region13
    $region12: #{tpu_custom_call.1} parent=1 // pred_region
      %s34 = ssub.s32 128, 128
      %35 = vsyncadd [#allocation4], %s34
      %s37 = sshll.u32 [#allocation5], 4
      %s38 = int_to_ptr.vmem [resolvable:$true] %s37
      %40 = dma.vmem_to_hbm [thread:$0]  %s38, 128, %s1, [#allocation4]
    $region13: #{tpu_custom_call.1} parent=1 // pred_fallthru
      _
    // Predicated region
    $region14: #{tpu_custom_call.1} parent=1 // pred_check
      _
    $region15: #{tpu_custom_call.1} parent=1 // pred_check_branch
      %42 = sbr.rel (0) target = $region17
    $region16: #{tpu_custom_call.1} parent=1 // pred_region
      %43 = dma.done [#allocation4], 128
    $region17: #{tpu_custom_call.1} parent=1 // pred_fallthru
      _
    %44 = vsyncpa [#allocation3], 1
    %45 = vsyncpa [#allocation4], 1

</llo_original>
